<compile_context>
chip_gen: v7x
topology: tpu7x:2x2x1
jax: 0.10.0
libtpu: 0.0.40
codegen_flags: <defaults>
</compile_context>

<pallas_src>
import jax
import jax.numpy as jnp
from jax.experimental import pallas as pl
from jax.experimental.pallas import tpu as pltpu

N = 32    # semantic index dimension of the parsed LaTeX expression
NP = 128  # lane-padded index dimension (multiple of 128 -> dense vregs/stores)
TB = 128  # batch-tile rows fed to the MXU per grid step


def la_eval_kernel(tT_ref, g_ref, v_ref, u_ref, w_ref):
    """One (TB, NP) batch tile of:  w = v @ T^T @ g + 3 * u.

    tT_ref : (NP, NP)  T pre-transposed in the wrapper
    g_ref  : (NP, NP)  metric
    v_ref  : (TB, NP)  batch of v row-vectors
    u_ref  : (TB, NP)  batch of u row-vectors
    w_ref  : (TB, NP)  output
    """
    # y[n, c] = sum_b v[n, b] * T[c, b]   (standard MxKxN dot, no transpose)
    y = jnp.dot(v_ref[...], tT_ref[...], preferred_element_type=jnp.float32)
    # w[n, a] = sum_c y[n, c] * g[c, a]
    w = jnp.dot(y, g_ref[...], preferred_element_type=jnp.float32)
    # "+ 3 u_{a}"  (the scalar 3 is a parse-time constant from the LaTeX)
    w_ref[...] = (w + 3.0 * u_ref[...]).astype(w_ref.dtype)


def _pad_to(x, rows, cols):
    return jnp.pad(x, ((0, rows - x.shape[0]), (0, cols - x.shape[1])))


def la_model_forward(var_dict):
    """JAX wrapper mirroring LaModel.forward(var_dict).

    var_dict["v"] / ["u"] may be a single vector (N,) — original module
    semantics — or a batch (B, N) of independent evaluations sharing g, T.
    """
    g = var_dict["g"].astype(jnp.float32)              # (N, N) metric
    t = var_dict["T"].astype(jnp.float32)              # (N, N)
    v_in = var_dict["v"]
    u_in = var_dict["u"]
    single = (v_in.ndim == 1)
    v = jnp.atleast_2d(v_in).astype(jnp.float32)       # (B, N)
    u = jnp.atleast_2d(u_in).astype(jnp.float32)       # (B, N)

    b = v.shape[0]
    n = g.shape[0]
    bp = pl.cdiv(b, TB) * TB                            # pad batch to tile

    # Zero padding is exact for this linear expression: padded rows/cols of
    # g, T, v, u are zero, so the first n output lanes are unchanged.
    tT_p = _pad_to(t, NP, NP).T                         # pre-transpose (XLA, cheap)
    g_p = _pad_to(g, NP, NP)
    v_p = _pad_to(v, bp, NP)
    u_p = _pad_to(u, bp, NP)

    grid = (bp // TB,)
    mat_spec = pl.BlockSpec((NP, NP), lambda i: (0, 0))
    vec_spec = pl.BlockSpec((TB, NP), lambda i: (i, 0))

    cost = pl.CostEstimate(
        flops=2 * 2 * bp * NP * NP + 2 * bp * NP,       # two GEMMs + axpy
        transcendentals=0,
        bytes_accessed=4 * (2 * NP * NP + 3 * bp * NP),
    )

    w_p = pl.pallas_call(
        la_eval_kernel,
        out_shape=jax.ShapeDtypeStruct((bp, NP), jnp.float32),
        grid=grid,
        in_specs=[mat_spec, mat_spec, vec_spec, vec_spec],
        out_specs=vec_spec,
        compiler_params=pltpu.CompilerParams(
            dimension_semantics=("parallel",),          # batch axis -> megacore
        ),
        cost_estimate=cost,
    )(tT_p, g_p, v_p, u_p)

    w = w_p[:b, :n]
    return w[0] if single else w


def la_model_forward_ref(var_dict):
    """Pure-JAX reference of the same parsed expression."""
    g = var_dict["g"].astype(jnp.float32)
    t = var_dict["T"].astype(jnp.float32)
    v = jnp.atleast_2d(var_dict["v"]).astype(jnp.float32)
    u = jnp.atleast_2d(var_dict["u"]).astype(jnp.float32)
    w = jnp.einsum("ca,cb,nb->na", g, t, v) + 3.0 * u
    return w[0] if var_dict["v"].ndim == 1 else w


if __name__ == "__main__":
    key = jax.random.PRNGKey(0)
    kg, kt, kv, ku, kv1, ku1 = jax.random.split(key, 6)

    B = 256  # batch of independent forward() evaluations sharing g, T

    raw_g = jax.random.normal(kg, (N, N), dtype=jnp.float32)
    g = 0.5 * (raw_g + raw_g.T)                         # symmetric metric
    T = jax.random.normal(kt, (N, N), dtype=jnp.float32)

    # Batched var_dict: B independent (v, u) pairs.
    var_dict_batched = {
        "g": g,
        "T": T,
        "v": jax.random.normal(kv, (B, N), dtype=jnp.float32),
        "u": jax.random.normal(ku, (B, N), dtype=jnp.float32),
    }
    # Single-evaluation var_dict (original LaModel.forward semantics).
    var_dict_single = {
        "g": g,
        "T": T,
        "v": jax.random.normal(kv1, (N,), dtype=jnp.float32),
        "u": jax.random.normal(ku1, (N,), dtype=jnp.float32),
    }

    out_b = jax.block_until_ready(la_model_forward(var_dict_batched))
    ref_b = jax.block_until_ready(la_model_forward_ref(var_dict_batched))
    assert out_b.shape == (B, N)
    assert jnp.allclose(out_b, ref_b, rtol=1e-4, atol=1e-3)

    out_s = jax.block_until_ready(la_model_forward(var_dict_single))
    ref_s = jax.block_until_ready(la_model_forward_ref(var_dict_single))
    assert out_s.shape == (N,)
    assert jnp.allclose(out_s, ref_s, rtol=1e-4, atol=1e-3)

    print("KERNEL_OK")
</pallas_src>

<mosaic_0001>
module attributes {stable_mosaic.version = 11 : i64} {
  func.func @la_eval_kernel(%arg0: i32, %arg1: memref<128x128xf32, #tpu.memory_space<vmem>>, %arg2: memref<128x128xf32, #tpu.memory_space<vmem>>, %arg3: memref<128x128xf32, #tpu.memory_space<vmem>>, %arg4: memref<128x128xf32, #tpu.memory_space<vmem>>, %arg5: memref<128x128xf32, #tpu.memory_space<vmem>>) attributes {dimension_semantics = [#tpu.dimension_semantics<parallel>], iteration_bounds = array<i64: 2>, scalar_prefetch = 0 : i64, scratch_operands = 0 : i64, tpu.core_type = #tpu.core_type<tc>, window_params = [{pipeline_mode = #tpu.pipeline_mode<synchronous>, transform_indices = @transform_0, window_bounds = array<i64: 128, 128>}, {pipeline_mode = #tpu.pipeline_mode<synchronous>, transform_indices = @transform_1, window_bounds = array<i64: 128, 128>}, {transform_indices = @transform_2, window_bounds = array<i64: 128, 128>}, {transform_indices = @transform_3, window_bounds = array<i64: 128, 128>}, {transform_indices = @transform_4, window_bounds = array<i64: 128, 128>}]} {
    %c0 = arith.constant 0 : index
    %c0_0 = arith.constant 0 : index
    %0 = vector.load %arg3[%c0, %c0_0] : memref<128x128xf32, #tpu.memory_space<vmem>>, vector<128x128xf32>
    %c0_1 = arith.constant 0 : index
    %c0_2 = arith.constant 0 : index
    %1 = vector.load %arg1[%c0_1, %c0_2] : memref<128x128xf32, #tpu.memory_space<vmem>>, vector<128x128xf32>
    %cst = arith.constant dense<0.000000e+00> : vector<128x128xf32>
    %2 = tpu.matmul %0, %1, %cst {dimension_numbers = #tpu.dot_dimension_numbers<[1], [0], [0], [1], [0, 0, 1, 1], [], []>} : vector<128x128xf32>, vector<128x128xf32>, vector<128x128xf32> -> vector<128x128xf32>
    %c0_3 = arith.constant 0 : index
    %c0_4 = arith.constant 0 : index
    %3 = vector.load %arg2[%c0_3, %c0_4] : memref<128x128xf32, #tpu.memory_space<vmem>>, vector<128x128xf32>
    %cst_5 = arith.constant dense<0.000000e+00> : vector<128x128xf32>
    %4 = tpu.matmul %2, %3, %cst_5 {dimension_numbers = #tpu.dot_dimension_numbers<[1], [0], [0], [1], [0, 0, 1, 1], [], []>} : vector<128x128xf32>, vector<128x128xf32>, vector<128x128xf32> -> vector<128x128xf32>
    %c0_6 = arith.constant 0 : index
    %c0_7 = arith.constant 0 : index
    %5 = vector.load %arg4[%c0_6, %c0_7] : memref<128x128xf32, #tpu.memory_space<vmem>>, vector<128x128xf32>
    %cst_8 = arith.constant 3.000000e+00 : f32
    %6 = vector.broadcast %cst_8 : f32 to vector<128x128xf32>
    %7 = arith.mulf %6, %5 : vector<128x128xf32>
    %8 = arith.addf %4, %7 : vector<128x128xf32>
    %c0_9 = arith.constant 0 : index
    %c0_10 = arith.constant 0 : index
    %9 = vector.load %arg5[%c0_9, %c0_10] : memref<128x128xf32, #tpu.memory_space<vmem>>, vector<128x128xf32>
    tpu.vector_store %arg5[%c0_9, %c0_10], %8 {strides = array<i32>} : memref<128x128xf32, #tpu.memory_space<vmem>>, vector<128x128xf32>,
    return
  }
  func.func @transform_0(%arg0: i32) -> (i32, i32) {
    %c0_i32 = arith.constant 0 : i32
    %c0_i32_0 = arith.constant 0 : i32
    %c0_i32_1 = arith.constant 0 : i32
    return %c0_i32, %c0_i32_0 : i32, i32
  }
  func.func @transform_1(%arg0: i32) -> (i32, i32) {
    %c0_i32 = arith.constant 0 : i32
    %c0_i32_0 = arith.constant 0 : i32
    %c0_i32_1 = arith.constant 0 : i32
    return %c0_i32, %c0_i32_0 : i32, i32
  }
  func.func @transform_2(%arg0: i32) -> (i32, i32) {
    %c0_i32 = arith.constant 0 : i32
    %c0_i32_0 = arith.constant 0 : i32
    return %arg0, %c0_i32 : i32, i32
  }
  func.func @transform_3(%arg0: i32) -> (i32, i32) {
    %c0_i32 = arith.constant 0 : i32
    %c0_i32_0 = arith.constant 0 : i32
    return %arg0, %c0_i32 : i32, i32
  }
  func.func @transform_4(%arg0: i32) -> (i32, i32) {
    %c0_i32 = arith.constant 0 : i32
    %c0_i32_0 = arith.constant 0 : i32
    return %arg0, %c0_i32 : i32, i32
  }
}

</mosaic_0001>

<llo_original>
// kernel: tpu_custom_call.1
$region0: #{tpu_custom_call.1}
  #allocation0 [shape = 'u32[]', space=smem, size = 0x4, offset = 0x4, fixed_abs, tag = 'smem constant byte address 0x4 - core index']
  #allocation1 [shape = 'u32[144,128]{1,0:T(1,128)}', space=vmem, size = 0x12000, scoped, tag = 'internal scratch']
  %s0 = inlined_call_operand.hbm [shape: f32[128,128], index: 0, kind: input, shape index: {}]
  %s1 = inlined_call_operand.hbm [shape: f32[128,128], index: 1, kind: input, shape index: {}]
  %s2 = inlined_call_operand.hbm [shape: f32[256,128], index: 2, kind: input, shape index: {}]
  %s3 = inlined_call_operand.hbm [shape: f32[256,128], index: 3, kind: input, shape index: {}]
  %s4 = inlined_call_operand.hbm [shape: f32[256,128], index: 4, kind: output, shape index: {}]
  %s5 = sld [smem:[#allocation0]]
  $region65: #{tpu_custom_call.1} parent=0
    _
  %s7 = ssub.s32 1, %s5
  %s8 = scalar_select 0, %s7, %s5
  $region1: #{tpu_custom_call.1} parent=0
    #allocation2 [shape = 'u8[65536]{0}', space=vmem, size = 0x10000, scoped, tag = 'input window, operand 0, single buffered']
    #allocation3 [shape = 's32[2]{0}', space=sflag, size = 0x8, scoped, tag = 'scoped memory for tpu_custom_call.1']
    #allocation4 [shape = 's32[2]{0}', space=sflag, size = 0x8, scoped, tag = 'scoped memory for tpu_custom_call.1']
    #allocation5 [shape = 'u8[65536]{0}', space=vmem, size = 0x10000, scoped, tag = 'input window, operand 1, single buffered']
    #allocation6 [shape = 's32[1]{0}', space=sflag, size = 0x4, scoped, tag = 'scoped memory for tpu_custom_call.1']
    #allocation7 [shape = 'u8[131072]{0}', space=vmem, size = 0x20000, scoped, tag = 'input window, operand 2']
    #allocation8 [shape = 'u8[131072]{0}', space=vmem, size = 0x20000, scoped, tag = 'input window, operand 3']
    #allocation9 [shape = 'u8[131072]{0}', space=vmem, size = 0x20000, scoped, tag = 'output window, operand 0']
    %9 = vsyncpa [#allocation3], 0
    %10 = vsyncpa [#allocation6], 0
    %11 = vsyncpa [#allocation4], 0
    %s12 = scalar_lea.sflag [#allocation4], 1
    %13 = vsyncpa %s12, 0
    loop: start=0, step=1, limit=4
    $region2: #{tpu_custom_call.1} parent=1 // loop_pre_header
      _
    $region3: #{tpu_custom_call.1} parent=1 // loop_header
      %s15 = sphi 0, %s19
      %p16 = scmp.ge.s32.totalorder %s15, 4
      %s23 = sphi 0, %s23
      %s25 = sphi 0, %s23
      %s26 = sphi 0, %s25
      %s40 = sphi 0, %s26
      %s44 = sphi 0, %s44
      %s46 = sphi 0, %s44
      %s47 = sphi 0, %s46
      %s61 = sphi 0, %s47
      %s67 = sphi 0, %s69
      %s70 = sphi 0, %s67
      %s71 = sphi 0, %s70
      %s87 = sphi 0, %s71
      %s93 = sphi 0, %s95
      %s96 = sphi 0, %s93
      %s97 = sphi 0, %s96
      %s113 = sphi 0, %s97
      %s119 = sphi 0, %s121
      %s122 = sphi 0, %s119
      %s123 = sphi 0, %s122
      %s139 = sphi 0, %s123
    $region4: #{tpu_custom_call.1} parent=1 // loop_header_branch
      %18 = sbr.rel (%p16) target = $region8
    $region5: #{tpu_custom_call.1} parent=1 // loop_body
      %s20 = ssub.s32 %s15, 1
      %s21 = ssub.s32 %s15, 2
      %s22 = sadd.s32 %s15, 1
      %s24 = sadd.s32 %s23, 1
      %p27 = scmp.eq.s32.totalorder %s15, 1
      %p28 = scmp.ne.s32.totalorder %s23, %s25
      %p29 = scmp.eq.s32.totalorder %s15, 0
      %p30 = por %p28, %p29
      %p31 = scmp.ne.s32.totalorder %s23, %s25
      %p32 = scmp.eq.s32.totalorder %s20, 1
      %p33 = por %p31, %p32
      %p34 = scmp.ne.s32.totalorder %s25, %s26
      %p35 = scmp.eq.s32.totalorder %s20, 0
      %p36 = por %p34, %p35
      %p37 = scmp.ne.s32.totalorder %s25, %s26
      %p38 = scmp.eq.s32.totalorder %s21, 1
      %p39 = por %p37, %p38
      %p41 = scmp.ne.s32.totalorder %s26, %s40
      %p42 = scmp.eq.s32.totalorder %s21, 0
      %p43 = por %p41, %p42
      %s45 = sadd.s32 %s44, 1
      %p48 = scmp.eq.s32.totalorder %s15, 1
      %p49 = scmp.ne.s32.totalorder %s44, %s46
      %p50 = scmp.eq.s32.totalorder %s15, 0
      %p51 = por %p49, %p50
      %p52 = scmp.ne.s32.totalorder %s44, %s46
      %p53 = scmp.eq.s32.totalorder %s20, 1
      %p54 = por %p52, %p53
      %p55 = scmp.ne.s32.totalorder %s46, %s47
      %p56 = scmp.eq.s32.totalorder %s20, 0
      %p57 = por %p55, %p56
      %p58 = scmp.ne.s32.totalorder %s46, %s47
      %p59 = scmp.eq.s32.totalorder %s21, 1
      %p60 = por %p58, %p59
      %p62 = scmp.ne.s32.totalorder %s47, %s61
      %p63 = scmp.eq.s32.totalorder %s21, 0
      %p64 = por %p62, %p63
      %s65 = ssub.s32 %s15, %s22
      %p66 = scmp.eq.s32.totalorder %s65, 0
      %s68 = sadd.s32 %s67, 1
      %s69 = scalar_select %p66, %s67, %s68
      %p72 = pneg %p66
      %p73 = scmp.eq.s32.totalorder %s15, 1
      %p74 = por %p72, %p73
      %p75 = scmp.ne.s32.totalorder %s67, %s70
      %p76 = scmp.eq.s32.totalorder %s15, 0
      %p77 = por %p75, %p76
      %p78 = scmp.ne.s32.totalorder %s67, %s70
      %p79 = scmp.eq.s32.totalorder %s20, 1
      %p80 = por %p78, %p79
      %p81 = scmp.ne.s32.totalorder %s70, %s71
      %p82 = scmp.eq.s32.totalorder %s20, 0
      %p83 = por %p81, %p82
      %p84 = scmp.ne.s32.totalorder %s70, %s71
      %p85 = scmp.eq.s32.totalorder %s21, 1
      %p86 = por %p84, %p85
      %p88 = scmp.ne.s32.totalorder %s71, %s87
      %p89 = scmp.eq.s32.totalorder %s21, 0
      %p90 = por %p88, %p89
      %s91 = ssub.s32 %s15, %s22
      %p92 = scmp.eq.s32.totalorder %s91, 0
      %s94 = sadd.s32 %s93, 1
      %s95 = scalar_select %p92, %s93, %s94
      %p98 = pneg %p92
      %p99 = scmp.eq.s32.totalorder %s15, 1
      %p100 = por %p98, %p99
      %p101 = scmp.ne.s32.totalorder %s93, %s96
      %p102 = scmp.eq.s32.totalorder %s15, 0
      %p103 = por %p101, %p102
      %p104 = scmp.ne.s32.totalorder %s93, %s96
      %p105 = scmp.eq.s32.totalorder %s20, 1
      %p106 = por %p104, %p105
      %p107 = scmp.ne.s32.totalorder %s96, %s97
      %p108 = scmp.eq.s32.totalorder %s20, 0
      %p109 = por %p107, %p108
      %p110 = scmp.ne.s32.totalorder %s96, %s97
      %p111 = scmp.eq.s32.totalorder %s21, 1
      %p112 = por %p110, %p111
      %p114 = scmp.ne.s32.totalorder %s97, %s113
      %p115 = scmp.eq.s32.totalorder %s21, 0
      %p116 = por %p114, %p115
      %s117 = ssub.s32 %s15, %s22
      %p118 = scmp.eq.s32.totalorder %s117, 0
      %s120 = sadd.s32 %s119, 1
      %s121 = scalar_select %p118, %s119, %s120
      %p124 = pneg %p118
      %p125 = scmp.eq.s32.totalorder %s15, 1
      %p126 = por %p124, %p125
      %p127 = scmp.ne.s32.totalorder %s119, %s122
      %p128 = scmp.eq.s32.totalorder %s15, 0
      %p129 = por %p127, %p128
      %p130 = scmp.ne.s32.totalorder %s119, %s122
      %p131 = scmp.eq.s32.totalorder %s20, 1
      %p132 = por %p130, %p131
      %p133 = scmp.ne.s32.totalorder %s122, %s123
      %p134 = scmp.eq.s32.totalorder %s20, 0
      %p135 = por %p133, %p134
      %p136 = scmp.ne.s32.totalorder %s122, %s123
      %p137 = scmp.eq.s32.totalorder %s21, 1
      %p138 = por %p136, %p137
      %p140 = scmp.ne.s32.totalorder %s123, %s139
      %p141 = scmp.eq.s32.totalorder %s21, 0
      %p142 = por %p140, %p141
      %p143 = scmp.le.s32.totalorder 1, %s15
      %p144 = scmp.lt.s32.totalorder %s15, 3
      %p145 = pnand %p143, %p144
      %p146 = pneg %p145
      // Predicated region
      $region9: #{tpu_custom_call.1} parent=5 // pred_check
        _
      $region10: #{tpu_custom_call.1} parent=5 // pred_check_branch
        %148 = sbr.rel (%p145) target = $region12
      $region11: #{tpu_custom_call.1} parent=5 // pred_region
        %s149 = ssub.s32 %s15, 1
        // Predicated region
        $region13: #{tpu_custom_call.1} parent=11 // pred_check
          %p150 = pneg %p36
        $region14: #{tpu_custom_call.1} parent=11 // pred_check_branch
          %152 = sbr.rel (%p150) target = $region16
        $region15: #{tpu_custom_call.1} parent=11 // pred_region
          %s154 = ssub.s32 2048, 2048
          %155 = vsyncadd [#allocation3], %s154
          %s156 = sshll.u32 [#allocation2], 4
          %s157 = int_to_ptr.vmem [resolvable:$true] %s156
          %162 = dma.hbm_to_vmem [thread:$0]  %s0, 2048, %s157, [#allocation3], 128, 128, 8
        $region16: #{tpu_custom_call.1} parent=11 // pred_fallthru
          _
        // Predicated region
        $region17: #{tpu_custom_call.1} parent=11 // pred_check
          %p163 = pneg %p57
        $region18: #{tpu_custom_call.1} parent=11 // pred_check_branch
          %165 = sbr.rel (%p163) target = $region20
        $region19: #{tpu_custom_call.1} parent=11 // pred_region
          %s167 = ssub.s32 2048, 2048
          %168 = vsyncadd [#allocation6], %s167
          %s169 = sshll.u32 [#allocation5], 4
          %s170 = int_to_ptr.vmem [resolvable:$true] %s169
          %175 = dma.hbm_to_vmem [thread:$0]  %s1, 2048, %s170, [#allocation6], 128, 128, 8
        $region20: #{tpu_custom_call.1} parent=11 // pred_fallthru
          _
      $region12: #{tpu_custom_call.1} parent=5 // pred_fallthru
        _
      %p176 = scmp.lt.s32.totalorder %s15, 2
      // Predicated region
      $region21: #{tpu_custom_call.1} parent=5 // pred_check
        %p177 = pneg %p176
      $region22: #{tpu_custom_call.1} parent=5 // pred_check_branch
        %179 = sbr.rel (%p177) target = $region24
      $region23: #{tpu_custom_call.1} parent=5 // pred_region
        // Predicated region
        $region25: #{tpu_custom_call.1} parent=23 // pred_check
          %p180 = pneg %p77
        $region26: #{tpu_custom_call.1} parent=23 // pred_check_branch
          %182 = sbr.rel (%p180) target = $region28
        $region27: #{tpu_custom_call.1} parent=23 // pred_region
          %s183 = sand.u32 %s15, 1
          %s184 = scalar_lea.sflag [#allocation3], %s183
          %s185 = sand.u32 %s67, 1
          %s186 = smul.addr %s185, 128
          %s187 = scalar_lea.vmem [#allocation7], %s186
          %s188 = smul.u32 16, %s15
          %s190 = ssub.s32 2048, 2048
          %191 = vsyncadd %s184, %s190
          %s192 = smul.addr %s188, 128
          %s193 = scalar_lea.hbm %s2, %s192
          %s194 = sshll.u32 %s187, 4
          %s195 = int_to_ptr.vmem [resolvable:$true] %s194
          %200 = dma.hbm_to_vmem [thread:$0]  %s193, 2048, %s195, %s184, 128, 128, 8
        $region28: #{tpu_custom_call.1} parent=23 // pred_fallthru
          _
        // Predicated region
        $region29: #{tpu_custom_call.1} parent=23 // pred_check
          %p201 = pneg %p103
        $region30: #{tpu_custom_call.1} parent=23 // pred_check_branch
          %203 = sbr.rel (%p201) target = $region32
        $region31: #{tpu_custom_call.1} parent=23 // pred_region
          %s204 = sand.u32 %s15, 1
          %s205 = scalar_lea.sflag [#allocation3], %s204
          %s206 = sand.u32 %s93, 1
          %s207 = smul.addr %s206, 128
          %s208 = scalar_lea.vmem [#allocation8], %s207
          %s209 = smul.u32 16, %s15
          %s211 = ssub.s32 2048, 2048
          %212 = vsyncadd %s205, %s211
          %s213 = smul.addr %s209, 128
          %s214 = scalar_lea.hbm %s3, %s213
          %s215 = sshll.u32 %s208, 4
          %s216 = int_to_ptr.vmem [resolvable:$true] %s215
          %221 = dma.hbm_to_vmem [thread:$0]  %s214, 2048, %s216, %s205, 128, 128, 8
        $region32: #{tpu_custom_call.1} parent=23 // pred_fallthru
          _
      $region24: #{tpu_custom_call.1} parent=5 // pred_fallthru
        _
      %p222 = scmp.le.s32.totalorder 1, %s15
      %p223 = scmp.lt.s32.totalorder %s15, 3
      %p224 = pnand %p222, %p223
      %p225 = pneg %p224
      // Predicated region
      $region33: #{tpu_custom_call.1} parent=5 // pred_check
        _
      $region34: #{tpu_custom_call.1} parent=5 // pred_check_branch
        %227 = sbr.rel (%p224) target = $region36
      $region35: #{tpu_custom_call.1} parent=5 // pred_region
        %s228 = ssub.s32 %s15, 1
        // Predicated region
        $region37: #{tpu_custom_call.1} parent=35 // pred_check
          %p229 = pneg %p36
        $region38: #{tpu_custom_call.1} parent=35 // pred_check_branch
          %231 = sbr.rel (%p229) target = $region40
        $region39: #{tpu_custom_call.1} parent=35 // pred_region
          %232 = dma.done [#allocation3], 2048
        $region40: #{tpu_custom_call.1} parent=35 // pred_fallthru
          _
        // Predicated region
        $region41: #{tpu_custom_call.1} parent=35 // pred_check
          %p233 = pneg %p57
        $region42: #{tpu_custom_call.1} parent=35 // pred_check_branch
          %235 = sbr.rel (%p233) target = $region44
        $region43: #{tpu_custom_call.1} parent=35 // pred_region
          %236 = dma.done [#allocation6], 2048
        $region44: #{tpu_custom_call.1} parent=35 // pred_fallthru
          _
        %s237 = sand.u32 %s20, 1
        %s238 = scalar_lea.sflag [#allocation3], %s237
        %s239 = sand.u32 %s70, 1
        %s240 = smul.addr %s239, 128
        %s241 = scalar_lea.vmem [#allocation7], %s240
        // Predicated region
        $region45: #{tpu_custom_call.1} parent=35 // pred_check
          %p242 = pneg %p83
        $region46: #{tpu_custom_call.1} parent=35 // pred_check_branch
          %244 = sbr.rel (%p242) target = $region48
        $region47: #{tpu_custom_call.1} parent=35 // pred_region
          %245 = dma.done %s238, 2048
        $region48: #{tpu_custom_call.1} parent=35 // pred_fallthru
          _
        %s246 = sand.u32 %s20, 1
        %s247 = scalar_lea.sflag [#allocation3], %s246
        %s248 = sand.u32 %s96, 1
        %s249 = smul.addr %s248, 128
        %s250 = scalar_lea.vmem [#allocation8], %s249
        // Predicated region
        $region49: #{tpu_custom_call.1} parent=35 // pred_check
          %p251 = pneg %p109
        $region50: #{tpu_custom_call.1} parent=35 // pred_check_branch
          %253 = sbr.rel (%p251) target = $region52
        $region51: #{tpu_custom_call.1} parent=35 // pred_region
          %254 = dma.done %s247, 2048
        $region52: #{tpu_custom_call.1} parent=35 // pred_fallthru
          _
        %p255 = pneg %p36
        %p256 = pneg %p33
        %p257 = pneg %p57
        %p258 = pneg %p54
        %s259 = sand.u32 %s20, 1
        %s260 = scalar_lea.sflag [#allocation3], %s259
        %s261 = sand.u32 %s70, 1
        %s262 = smul.addr %s261, 128
        %s263 = scalar_lea.vmem [#allocation7], %s262
        %p264 = pneg %p83
        %p265 = pneg %p80
        %s266 = sand.u32 %s20, 1
        %s267 = scalar_lea.sflag [#allocation3], %s266
        %s268 = sand.u32 %s96, 1
        %s269 = smul.addr %s268, 128
        %s270 = scalar_lea.vmem [#allocation8], %s269
        %p271 = pneg %p109
        %p272 = pneg %p106
        %p273 = pneg %p135
        %p274 = pneg %p132
        %s275 = sand.u32 %s122, 1
        %s276 = scalar_lea.sflag [#allocation4], %s275
        %s277 = sand.u32 %s122, 1
        %s278 = smul.addr %s277, 128
        %s279 = scalar_lea.vmem [#allocation9], %s278
        %s280 = smul.u32 16, %s20
        %s281 = smul.u32 16, %s20
        %s282 = smul.u32 16, %s20
        %v283 = vld [vmem:[%s241] sm:$0xff]
        %v284 = vld [vmem:[%s241 + $0x8] sm:$0xff]
        %v285 = vld [vmem:[%s241 + $0x10] sm:$0xff]
        %v286 = vld [vmem:[%s241 + $0x18] sm:$0xff]
        %v287 = vld [vmem:[%s241 + $0x20] sm:$0xff]
        %v288 = vld [vmem:[%s241 + $0x28] sm:$0xff]
        %v289 = vld [vmem:[%s241 + $0x30] sm:$0xff]
        %v290 = vld [vmem:[%s241 + $0x38] sm:$0xff]
        %v291 = vld [vmem:[%s241 + $0x40] sm:$0xff]
        %v292 = vld [vmem:[%s241 + $0x48] sm:$0xff]
        %v293 = vld [vmem:[%s241 + $0x50] sm:$0xff]
        %v294 = vld [vmem:[%s241 + $0x58] sm:$0xff]
        %v295 = vld [vmem:[%s241 + $0x60] sm:$0xff]
        %v296 = vld [vmem:[%s241 + $0x68] sm:$0xff]
        %v297 = vld [vmem:[%s241 + $0x70] sm:$0xff]
        %v298 = vld [vmem:[%s241 + $0x78] sm:$0xff]
        %v299 = vld [vmem:[#allocation2] sm:$0xff]
        %v300 = vld [vmem:[#allocation2 + $0x8] sm:$0xff]
        %v301 = vld [vmem:[#allocation2 + $0x10] sm:$0xff]
        %v302 = vld [vmem:[#allocation2 + $0x18] sm:$0xff]
        %v303 = vld [vmem:[#allocation2 + $0x20] sm:$0xff]
        %v304 = vld [vmem:[#allocation2 + $0x28] sm:$0xff]
        %v305 = vld [vmem:[#allocation2 + $0x30] sm:$0xff]
        %v306 = vld [vmem:[#allocation2 + $0x38] sm:$0xff]
        %v307 = vld [vmem:[#allocation2 + $0x40] sm:$0xff]
        %v308 = vld [vmem:[#allocation2 + $0x48] sm:$0xff]
        %v309 = vld [vmem:[#allocation2 + $0x50] sm:$0xff]
        %v310 = vld [vmem:[#allocation2 + $0x58] sm:$0xff]
        %v311 = vld [vmem:[#allocation2 + $0x60] sm:$0xff]
        %v312 = vld [vmem:[#allocation2 + $0x68] sm:$0xff]
        %v313 = vld [vmem:[#allocation2 + $0x70] sm:$0xff]
        %v314 = vld [vmem:[#allocation2 + $0x78] sm:$0xff]
        %315 = vmatprep.subr.mxu0 0.0
        %316 = vmatpush1.msra.mxu0 %v299
        %317 = vmatprep.subr.mxu0 0.0
        %318 = vmatpush1.msra.mxu0 %v300
        %319 = vmatprep.subr.mxu0 0.0
        %320 = vmatpush1.msra.mxu0 %v301
        %321 = vmatprep.subr.mxu0 0.0
        %322 = vmatpush1.msra.mxu0 %v302
        %323 = vmatprep.subr.mxu0 0.0
        %324 = vmatpush1.msra.mxu0 %v303
        %325 = vmatprep.subr.mxu0 0.0
        %326 = vmatpush1.msra.mxu0 %v304
        %327 = vmatprep.subr.mxu0 0.0
        %328 = vmatpush1.msra.mxu0 %v305
        %329 = vmatprep.subr.mxu0 0.0
        %330 = vmatpush1.msra.mxu0 %v306
        %331 = vmatprep.subr.mxu0 0.0
        %332 = vmatpush1.msra.mxu0 %v307
        %333 = vmatprep.subr.mxu0 0.0
        %334 = vmatpush1.msra.mxu0 %v308
        %335 = vmatprep.subr.mxu0 0.0
        %336 = vmatpush1.msra.mxu0 %v309
        %337 = vmatprep.subr.mxu0 0.0
        %338 = vmatpush1.msra.mxu0 %v310
        %339 = vmatprep.subr.mxu0 0.0
        %340 = vmatpush1.msra.mxu0 %v311
        %341 = vmatprep.subr.mxu0 0.0
        %342 = vmatpush1.msra.mxu0 %v312
        %343 = vmatprep.subr.mxu0 0.0
        %344 = vmatpush1.msra.mxu0 %v313
        %345 = vmatprep.subr.mxu0 0.0
        %346 = vmatpush1.msra.mxu0 %v314
        %347 = vmatprep.subr.mxu0 0.0
        %348 = vmatpush1.msra.mxu0 0.0
        %349 = vmatprep.subr.mxu0 0.0
        %350 = vmatpush1.msra.mxu0 0.0
        %351 = vmatprep.subr.mxu0 0.0
        %352 = vmatpush1.msra.mxu0 0.0
        %353 = vmatprep.subr.mxu0 0.0
        %354 = vmatpush1.msra.mxu0 0.0
        %355 = vmatprep.subr.mxu0 0.0
        %356 = vmatpush1.msra.mxu0 0.0
        %357 = vmatprep.subr.mxu0 0.0
        %358 = vmatpush1.msra.mxu0 0.0
        %359 = vmatprep.subr.mxu0 0.0
        %360 = vmatpush1.msra.mxu0 0.0
        %361 = vmatprep.subr.mxu0 0.0
        %362 = vmatpush1.msra.mxu0 0.0
        %363 = vmatprep.subr.mxu0 0.0
        %364 = vmatpush1.msra.mxu0 0.0
        %365 = vmatprep.subr.mxu0 0.0
        %366 = vmatpush1.msra.mxu0 0.0
        %367 = vmatprep.subr.mxu0 0.0
        %368 = vmatpush1.msra.mxu0 0.0
        %369 = vmatprep.subr.mxu0 0.0
        %370 = vmatpush1.msra.mxu0 0.0
        %371 = vmatprep.subr.mxu0 0.0
        %372 = vmatpush1.msra.mxu0 0.0
        %373 = vmatprep.subr.mxu0 0.0
        %374 = vmatpush1.msra.mxu0 0.0
        %375 = vmatprep.subr.mxu0 0.0
        %376 = vmatpush1.msra.mxu0 0.0
        %377 = vmatprep.subr.mxu0 0.0
        %378 = vmatpush1.msra.mxu0 0.0
        %379 = vmatprep.mubr.f32.mxu0 0.0
        %380 = vmatmul.mubr.f32.gmra.mrb[0].mxu0 %v283
        %v381 = vpop.f32.mrb[0].mxu0
        %v382 = vadd.f32 0.0, %v381
        %v383 = vpop.f32.mrb[0].mxu0
        %384 = vmatprep.mubr.f32.mxu0 0.0
        %385 = vmatmul.mubr.f32.gmra.mrb[0].mxu0 %v284
        %v386 = vpop.f32.mrb[0].mxu0
        %v387 = vadd.f32 0.0, %v386
        %v388 = vpop.f32.mrb[0].mxu0
        %389 = vmatprep.mubr.f32.mxu0 0.0
        %390 = vmatmul.mubr.f32.gmra.mrb[0].mxu0 %v285
        %v391 = vpop.f32.mrb[0].mxu0
        %v392 = vadd.f32 0.0, %v391
        %v393 = vpop.f32.mrb[0].mxu0
        %394 = vmatprep.mubr.f32.mxu0 0.0
        %395 = vmatmul.mubr.f32.gmra.mrb[0].mxu0 %v286
        %v396 = vpop.f32.mrb[0].mxu0
        %v397 = vadd.f32 0.0, %v396
        %v398 = vpop.f32.mrb[0].mxu0
        %399 = vmatprep.mubr.f32.mxu0 0.0
        %400 = vmatmul.mubr.f32.gmra.mrb[0].mxu0 %v287
        %v401 = vpop.f32.mrb[0].mxu0
        %v402 = vadd.f32 0.0, %v401
        %v403 = vpop.f32.mrb[0].mxu0
        %404 = vmatprep.mubr.f32.mxu0 0.0
        %405 = vmatmul.mubr.f32.gmra.mrb[0].mxu0 %v288
        %v406 = vpop.f32.mrb[0].mxu0
        %v407 = vadd.f32 0.0, %v406
        %v408 = vpop.f32.mrb[0].mxu0
        %409 = vmatprep.mubr.f32.mxu0 0.0
        %410 = vmatmul.mubr.f32.gmra.mrb[0].mxu0 %v289
        %v411 = vpop.f32.mrb[0].mxu0
        %v412 = vadd.f32 0.0, %v411
        %v413 = vpop.f32.mrb[0].mxu0
        %414 = vmatprep.mubr.f32.mxu0 0.0
        %415 = vmatmul.mubr.f32.gmra.mrb[0].mxu0 %v290
        %v416 = vpop.f32.mrb[0].mxu0
        %v417 = vadd.f32 0.0, %v416
        %v418 = vpop.f32.mrb[0].mxu0
        %419 = vmatprep.mubr.f32.mxu0 0.0
        %420 = vmatmul.mubr.f32.gmra.mrb[0].mxu0 %v291
        %v421 = vpop.f32.mrb[0].mxu0
        %v422 = vadd.f32 0.0, %v421
        %v423 = vpop.f32.mrb[0].mxu0
        %424 = vmatprep.mubr.f32.mxu0 0.0
        %425 = vmatmul.mubr.f32.gmra.mrb[0].mxu0 %v292
        %v426 = vpop.f32.mrb[0].mxu0
        %v427 = vadd.f32 0.0, %v426
        %v428 = vpop.f32.mrb[0].mxu0
        %429 = vmatprep.mubr.f32.mxu0 0.0
        %430 = vmatmul.mubr.f32.gmra.mrb[0].mxu0 %v293
        %v431 = vpop.f32.mrb[0].mxu0
        %v432 = vadd.f32 0.0, %v431
        %v433 = vpop.f32.mrb[0].mxu0
        %434 = vmatprep.mubr.f32.mxu0 0.0
        %435 = vmatmul.mubr.f32.gmra.mrb[0].mxu0 %v294
        %v436 = vpop.f32.mrb[0].mxu0
        %v437 = vadd.f32 0.0, %v436
        %v438 = vpop.f32.mrb[0].mxu0
        %439 = vmatprep.mubr.f32.mxu0 0.0
        %440 = vmatmul.mubr.f32.gmra.mrb[0].mxu0 %v295
        %v441 = vpop.f32.mrb[0].mxu0
        %v442 = vadd.f32 0.0, %v441
        %v443 = vpop.f32.mrb[0].mxu0
        %444 = vmatprep.mubr.f32.mxu0 0.0
        %445 = vmatmul.mubr.f32.gmra.mrb[0].mxu0 %v296
        %v446 = vpop.f32.mrb[0].mxu0
        %v447 = vadd.f32 0.0, %v446
        %v448 = vpop.f32.mrb[0].mxu0
        %449 = vmatprep.mubr.f32.mxu0 0.0
        %450 = vmatmul.mubr.f32.gmra.mrb[0].mxu0 %v297
        %v451 = vpop.f32.mrb[0].mxu0
        %v452 = vadd.f32 0.0, %v451
        %v453 = vpop.f32.mrb[0].mxu0
        %454 = vmatprep.mubr.f32.mxu0 0.0
        %455 = vmatmul.mubr.f32.gmra.mrb[0].mxu0 %v298
        %v456 = vpop.f32.mrb[0].mxu0
        %v457 = vadd.f32 0.0, %v456
        %v458 = vpop.f32.mrb[0].mxu0
        %459 = vdwg.mxu0
        %v460 = vld [vmem:[#allocation5] sm:$0xff]
        %v461 = vld [vmem:[#allocation5 + $0x8] sm:$0xff]
        %v462 = vld [vmem:[#allocation5 + $0x10] sm:$0xff]
        %v463 = vld [vmem:[#allocation5 + $0x18] sm:$0xff]
        %v464 = vld [vmem:[#allocation5 + $0x20] sm:$0xff]
        %v465 = vld [vmem:[#allocation5 + $0x28] sm:$0xff]
        %v466 = vld [vmem:[#allocation5 + $0x30] sm:$0xff]
        %v467 = vld [vmem:[#allocation5 + $0x38] sm:$0xff]
        %v468 = vld [vmem:[#allocation5 + $0x40] sm:$0xff]
        %v469 = vld [vmem:[#allocation5 + $0x48] sm:$0xff]
        %v470 = vld [vmem:[#allocation5 + $0x50] sm:$0xff]
        %v471 = vld [vmem:[#allocation5 + $0x58] sm:$0xff]
        %v472 = vld [vmem:[#allocation5 + $0x60] sm:$0xff]
        %v473 = vld [vmem:[#allocation5 + $0x68] sm:$0xff]
        %v474 = vld [vmem:[#allocation5 + $0x70] sm:$0xff]
        %v475 = vld [vmem:[#allocation5 + $0x78] sm:$0xff]
        %v476 = vld [vmem:[%s250] sm:$0xff]
        %v477 = vld [vmem:[%s250 + $0x8] sm:$0xff]
        %v478 = vld [vmem:[%s250 + $0x10] sm:$0xff]
        %v479 = vld [vmem:[%s250 + $0x18] sm:$0xff]
        %v480 = vld [vmem:[%s250 + $0x20] sm:$0xff]
        %v481 = vld [vmem:[%s250 + $0x28] sm:$0xff]
        %v482 = vld [vmem:[%s250 + $0x30] sm:$0xff]
        %v483 = vld [vmem:[%s250 + $0x38] sm:$0xff]
        %v484 = vld [vmem:[%s250 + $0x40] sm:$0xff]
        %v485 = vld [vmem:[%s250 + $0x48] sm:$0xff]
        %v486 = vld [vmem:[%s250 + $0x50] sm:$0xff]
        %v487 = vld [vmem:[%s250 + $0x58] sm:$0xff]
        %v488 = vld [vmem:[%s250 + $0x60] sm:$0xff]
        %v489 = vld [vmem:[%s250 + $0x68] sm:$0xff]
        %v490 = vld [vmem:[%s250 + $0x70] sm:$0xff]
        %v491 = vld [vmem:[%s250 + $0x78] sm:$0xff]
        %v492 = vmul.f32 %v476, 3.0
        %v493 = vmul.f32 %v477, 3.0
        %v494 = vmul.f32 %v478, 3.0
        %v495 = vmul.f32 %v479, 3.0
        %v496 = vmul.f32 %v480, 3.0
        %v497 = vmul.f32 %v481, 3.0
        %v498 = vmul.f32 %v482, 3.0
        %v499 = vmul.f32 %v483, 3.0
        %v500 = vmul.f32 %v484, 3.0
        %v501 = vmul.f32 %v485, 3.0
        %v502 = vmul.f32 %v486, 3.0
        %v503 = vmul.f32 %v487, 3.0
        %v504 = vmul.f32 %v488, 3.0
        %v505 = vmul.f32 %v489, 3.0
        %v506 = vmul.f32 %v490, 3.0
        %v507 = vmul.f32 %v491, 3.0
        %508 = vmatprep.subr.mxu0 0.0
        %509 = vmatpush1.msra.mxu0 %v460
        %510 = vmatprep.subr.mxu0 0.0
        %511 = vmatpush1.msra.mxu0 %v461
        %512 = vmatprep.subr.mxu0 0.0
        %513 = vmatpush1.msra.mxu0 %v462
        %514 = vmatprep.subr.mxu0 0.0
        %515 = vmatpush1.msra.mxu0 %v463
        %516 = vmatprep.subr.mxu0 0.0
        %517 = vmatpush1.msra.mxu0 %v464
        %518 = vmatprep.subr.mxu0 0.0
        %519 = vmatpush1.msra.mxu0 %v465
        %520 = vmatprep.subr.mxu0 0.0
        %521 = vmatpush1.msra.mxu0 %v466
        %522 = vmatprep.subr.mxu0 0.0
        %523 = vmatpush1.msra.mxu0 %v467
        %524 = vmatprep.subr.mxu0 0.0
        %525 = vmatpush1.msra.mxu0 %v468
        %526 = vmatprep.subr.mxu0 0.0
        %527 = vmatpush1.msra.mxu0 %v469
        %528 = vmatprep.subr.mxu0 0.0
        %529 = vmatpush1.msra.mxu0 %v470
        %530 = vmatprep.subr.mxu0 0.0
        %531 = vmatpush1.msra.mxu0 %v471
        %532 = vmatprep.subr.mxu0 0.0
        %533 = vmatpush1.msra.mxu0 %v472
        %534 = vmatprep.subr.mxu0 0.0
        %535 = vmatpush1.msra.mxu0 %v473
        %536 = vmatprep.subr.mxu0 0.0
        %537 = vmatpush1.msra.mxu0 %v474
        %538 = vmatprep.subr.mxu0 0.0
        %539 = vmatpush1.msra.mxu0 %v475
        %540 = vmatprep.subr.mxu0 0.0
        %541 = vmatpush1.msra.mxu0 0.0
        %542 = vmatprep.subr.mxu0 0.0
        %543 = vmatpush1.msra.mxu0 0.0
        %544 = vmatprep.subr.mxu0 0.0
        %545 = vmatpush1.msra.mxu0 0.0
        %546 = vmatprep.subr.mxu0 0.0
        %547 = vmatpush1.msra.mxu0 0.0
        %548 = vmatprep.subr.mxu0 0.0
        %549 = vmatpush1.msra.mxu0 0.0
        %550 = vmatprep.subr.mxu0 0.0
        %551 = vmatpush1.msra.mxu0 0.0
        %552 = vmatprep.subr.mxu0 0.0
        %553 = vmatpush1.msra.mxu0 0.0
        %554 = vmatprep.subr.mxu0 0.0
        %555 = vmatpush1.msra.mxu0 0.0
        %556 = vmatprep.subr.mxu0 0.0
        %557 = vmatpush1.msra.mxu0 0.0
        %558 = vmatprep.subr.mxu0 0.0
        %559 = vmatpush1.msra.mxu0 0.0
        %560 = vmatprep.subr.mxu0 0.0
        %561 = vmatpush1.msra.mxu0 0.0
        %562 = vmatprep.subr.mxu0 0.0
        %563 = vmatpush1.msra.mxu0 0.0
        %564 = vmatprep.subr.mxu0 0.0
        %565 = vmatpush1.msra.mxu0 0.0
        %566 = vmatprep.subr.mxu0 0.0
        %567 = vmatpush1.msra.mxu0 0.0
        %568 = vmatprep.subr.mxu0 0.0
        %569 = vmatpush1.msra.mxu0 0.0
        %570 = vmatprep.subr.mxu0 0.0
        %571 = vmatpush1.msra.mxu0 0.0
        %572 = vmatprep.mubr.f32.mxu0 0.0
        %573 = vmatmul.mubr.f32.gmra.mrb[0].mxu0 %v382
        %v574 = vpop.f32.mrb[0].mxu0
        %v575 = vadd.f32 %v492, %v574
        %v576 = vpop.f32.mrb[0].mxu0
        %577 = vmatprep.mubr.f32.mxu0 0.0
        %578 = vmatmul.mubr.f32.gmra.mrb[0].mxu0 %v387
        %v579 = vpop.f32.mrb[0].mxu0
        %v580 = vadd.f32 %v493, %v579
        %v581 = vpop.f32.mrb[0].mxu0
        %582 = vmatprep.mubr.f32.mxu0 0.0
        %583 = vmatmul.mubr.f32.gmra.mrb[0].mxu0 %v392
        %v584 = vpop.f32.mrb[0].mxu0
        %v585 = vadd.f32 %v494, %v584
        %v586 = vpop.f32.mrb[0].mxu0
        %587 = vmatprep.mubr.f32.mxu0 0.0
        %588 = vmatmul.mubr.f32.gmra.mrb[0].mxu0 %v397
        %v589 = vpop.f32.mrb[0].mxu0
        %v590 = vadd.f32 %v495, %v589
        %v591 = vpop.f32.mrb[0].mxu0
        %592 = vmatprep.mubr.f32.mxu0 0.0
        %593 = vmatmul.mubr.f32.gmra.mrb[0].mxu0 %v402
        %v594 = vpop.f32.mrb[0].mxu0
        %v595 = vadd.f32 %v496, %v594
        %v596 = vpop.f32.mrb[0].mxu0
        %597 = vmatprep.mubr.f32.mxu0 0.0
        %598 = vmatmul.mubr.f32.gmra.mrb[0].mxu0 %v407
        %v599 = vpop.f32.mrb[0].mxu0
        %v600 = vadd.f32 %v497, %v599
        %v601 = vpop.f32.mrb[0].mxu0
        %602 = vmatprep.mubr.f32.mxu0 0.0
        %603 = vmatmul.mubr.f32.gmra.mrb[0].mxu0 %v412
        %v604 = vpop.f32.mrb[0].mxu0
        %v605 = vadd.f32 %v498, %v604
        %v606 = vpop.f32.mrb[0].mxu0
        %607 = vmatprep.mubr.f32.mxu0 0.0
        %608 = vmatmul.mubr.f32.gmra.mrb[0].mxu0 %v417
        %v609 = vpop.f32.mrb[0].mxu0
        %v610 = vadd.f32 %v499, %v609
        %v611 = vpop.f32.mrb[0].mxu0
        %612 = vmatprep.mubr.f32.mxu0 0.0
        %613 = vmatmul.mubr.f32.gmra.mrb[0].mxu0 %v422
        %v614 = vpop.f32.mrb[0].mxu0
        %v615 = vadd.f32 %v500, %v614
        %v616 = vpop.f32.mrb[0].mxu0
        %617 = vmatprep.mubr.f32.mxu0 0.0
        %618 = vmatmul.mubr.f32.gmra.mrb[0].mxu0 %v427
        %v619 = vpop.f32.mrb[0].mxu0
        %v620 = vadd.f32 %v501, %v619
        %v621 = vpop.f32.mrb[0].mxu0
        %622 = vmatprep.mubr.f32.mxu0 0.0
        %623 = vmatmul.mubr.f32.gmra.mrb[0].mxu0 %v432
        %v624 = vpop.f32.mrb[0].mxu0
        %v625 = vadd.f32 %v502, %v624
        %v626 = vpop.f32.mrb[0].mxu0
        %627 = vmatprep.mubr.f32.mxu0 0.0
        %628 = vmatmul.mubr.f32.gmra.mrb[0].mxu0 %v437
        %v629 = vpop.f32.mrb[0].mxu0
        %v630 = vadd.f32 %v503, %v629
        %v631 = vpop.f32.mrb[0].mxu0
        %632 = vmatprep.mubr.f32.mxu0 0.0
        %633 = vmatmul.mubr.f32.gmra.mrb[0].mxu0 %v442
        %v634 = vpop.f32.mrb[0].mxu0
        %v635 = vadd.f32 %v504, %v634
        %v636 = vpop.f32.mrb[0].mxu0
        %637 = vmatprep.mubr.f32.mxu0 0.0
        %638 = vmatmul.mubr.f32.gmra.mrb[0].mxu0 %v447
        %v639 = vpop.f32.mrb[0].mxu0
        %v640 = vadd.f32 %v505, %v639
        %v641 = vpop.f32.mrb[0].mxu0
        %642 = vmatprep.mubr.f32.mxu0 0.0
        %643 = vmatmul.mubr.f32.gmra.mrb[0].mxu0 %v452
        %v644 = vpop.f32.mrb[0].mxu0
        %v645 = vadd.f32 %v506, %v644
        %v646 = vpop.f32.mrb[0].mxu0
        %647 = vmatprep.mubr.f32.mxu0 0.0
        %648 = vmatmul.mubr.f32.gmra.mrb[0].mxu0 %v457
        %v649 = vpop.f32.mrb[0].mxu0
        %v650 = vadd.f32 %v507, %v649
        %v651 = vpop.f32.mrb[0].mxu0
        %652 = vdwg.mxu0
        %653 = vst [vmem:[%s279] sm:$0xff] %v575
        %654 = vst [vmem:[%s279 + $0x8] sm:$0xff] %v580
        %655 = vst [vmem:[%s279 + $0x10] sm:$0xff] %v585
        %656 = vst [vmem:[%s279 + $0x18] sm:$0xff] %v590
        %657 = vst [vmem:[%s279 + $0x20] sm:$0xff] %v595
        %658 = vst [vmem:[%s279 + $0x28] sm:$0xff] %v600
        %659 = vst [vmem:[%s279 + $0x30] sm:$0xff] %v605
        %660 = vst [vmem:[%s279 + $0x38] sm:$0xff] %v610
        %661 = vst [vmem:[%s279 + $0x40] sm:$0xff] %v615
        %662 = vst [vmem:[%s279 + $0x48] sm:$0xff] %v620
        %663 = vst [vmem:[%s279 + $0x50] sm:$0xff] %v625
        %664 = vst [vmem:[%s279 + $0x58] sm:$0xff] %v630
        %665 = vst [vmem:[%s279 + $0x60] sm:$0xff] %v635
        %666 = vst [vmem:[%s279 + $0x68] sm:$0xff] %v640
        %667 = vst [vmem:[%s279 + $0x70] sm:$0xff] %v645
        %668 = vst [vmem:[%s279 + $0x78] sm:$0xff] %v650
        %s669 = sand.u32 %s122, 1
        %s670 = scalar_lea.sflag [#allocation4], %s669
        %s671 = sand.u32 %s122, 1
        %s672 = smul.addr %s671, 128
        %s673 = scalar_lea.vmem [#allocation9], %s672
        // Predicated region
        $region53: #{tpu_custom_call.1} parent=35 // pred_check
          %p674 = pneg %p132
        $region54: #{tpu_custom_call.1} parent=35 // pred_check_branch
          %676 = sbr.rel (%p674) target = $region56
        $region55: #{tpu_custom_call.1} parent=35 // pred_region
          %s677 = smul.u32 16, %s20
          %s679 = ssub.s32 2048, 2048
          %680 = vsyncadd %s670, %s679
          %s681 = smul.addr %s677, 128
          %s682 = scalar_lea.hbm %s4, %s681
          %s683 = sshll.u32 %s673, 4
          %s684 = int_to_ptr.vmem [resolvable:$true] %s683
          %689 = dma.vmem_to_hbm [thread:$0]  %s684, 2048, %s682, %s670, 128, 128, 8
        $region56: #{tpu_custom_call.1} parent=35 // pred_fallthru
          _
      $region36: #{tpu_custom_call.1} parent=5 // pred_fallthru
        _
      %p690 = scmp.le.s32.totalorder 2, %s15
      // Predicated region
      $region57: #{tpu_custom_call.1} parent=5 // pred_check
        %p691 = pneg %p690
      $region58: #{tpu_custom_call.1} parent=5 // pred_check_branch
        %693 = sbr.rel (%p691) target = $region60
      $region59: #{tpu_custom_call.1} parent=5 // pred_region
        %s694 = ssub.s32 %s15, 2
        // Predicated region
        $region61: #{tpu_custom_call.1} parent=59 // pred_check
          %p695 = pneg %p138
        $region62: #{tpu_custom_call.1} parent=59 // pred_check_branch
          %697 = sbr.rel (%p695) target = $region64
        $region63: #{tpu_custom_call.1} parent=59 // pred_region
          %s698 = sand.u32 %s123, 1
          %s699 = scalar_lea.sflag [#allocation4], %s698
          %s700 = sand.u32 %s123, 1
          %s701 = smul.addr %s700, 128
          %s702 = scalar_lea.vmem [#allocation9], %s701
          %703 = dma.done %s699, 2048
        $region64: #{tpu_custom_call.1} parent=59 // pred_fallthru
          _
      $region60: #{tpu_custom_call.1} parent=5 // pred_fallthru
        _
    $region6: #{tpu_custom_call.1} parent=1 // loop_footer
      %s19 = sadd.s32 1, %s15
    $region7: #{tpu_custom_call.1} parent=1 // loop_footer_branch
      %14 = sbr.rel target = $region3
    $region8: #{tpu_custom_call.1} parent=1 // loop_exit
      _
    %704 = vsyncpa [#allocation3], 1
    %s705 = scalar_lea.sflag [#allocation3], 1
    %706 = vsyncpa %s705, 1
    %707 = vsyncpa [#allocation6], 1
    %708 = vsyncpa [#allocation4], 1
    %s709 = scalar_lea.sflag [#allocation4], 1
    %710 = vsyncpa %s709, 1

</llo_original>
